<compile_context>
chip_gen: v6e
topology: v6e:2x2x1
jax: 0.10.0
libtpu: 0.0.40
codegen_flags: <defaults>
</compile_context>

<pallas_src>
import functools

import jax
import jax.numpy as jnp
from jax.experimental import pallas as pl
from jax.experimental.pallas import tpu as pltpu

VOCAB = 100
EMB = 7
HID = 2            # hidden_size
SEQ = 5            # input_size == sequence length fed to the LSTM
GATES = 4 * HID    # PyTorch gate order [i, f, g, o]


def _round_up(n, m):
    return (n + m - 1) // m * m


def _embedding_lstm_kernel(x_ref, ew_ref, whh_ref, wout_ref, bout_ref, o_ref):
    TB = x_ref.shape[1]

    x_idx = x_ref[...]          # (SEQ, TB) int32, time-major tokens
    ew_t = ew_ref[...]          # (GATES, VOCAB+1); column VOCAB holds b_ih+b_hh
    whh = whh_ref[...]          # (GATES, HID)  == PyTorch weight_hh_l0
    wout = wout_ref[...]        # (SEQ, SEQ*HID) == PyTorch linear_out.weight
    bout = bout_ref[...]        # (SEQ, 1)

    # ---- Input projections for all time steps, off the recurrence critical
    # ---- path.  One-hot is built batch-on-lanes; the extra all-ones row
    # ---- (index VOCAB) folds the gate bias into the same MXU matmul.
    vocab_iota = jax.lax.broadcasted_iota(jnp.int32, (VOCAB + 1, TB), 0)
    bias_row = vocab_iota == VOCAB                              # loop-invariant
    gx = []
    for t in range(SEQ):
        tok = x_idx[t:t + 1, :]                                 # (1, TB)
        onehot = ((vocab_iota == tok) | bias_row).astype(jnp.float32)
        gx.append(jnp.dot(ew_t, onehot,
                          preferred_element_type=jnp.float32))  # (GATES, TB)

    # ---- Loop-invariant constants (hoisted: the loop below is unrolled and
    # ---- JAX does not CSE broadcast_in_dim).
    row = jax.lax.broadcasted_iota(jnp.int32, (GATES, TB), 0)
    g_mask = (row >= 2 * HID) & (row < 3 * HID)                 # tanh (g) rows
    scale = jnp.where(g_mask, 1.0, 0.5)                         # pre-scale for sigmoid rows
    whh0 = jnp.broadcast_to(whh[:, 0:1], (GATES, TB))           # W_hh column 0
    whh1 = jnp.broadcast_to(whh[:, 1:2], (GATES, TB))           # W_hh column 1

    h = jnp.zeros((HID, TB), jnp.float32)
    c = jnp.zeros((HID, TB), jnp.float32)
    y = jnp.broadcast_to(bout, (SEQ, TB))                       # output bias folded in

    for t in range(SEQ):                                        # static unrolled recurrence
        # gates = x_t W_ih^T + b + h W_hh^T   (transposed: (GATES, TB))
        gates = gx[t] + whh0 * h[0:1, :] + whh1 * h[1:2, :]

        # One tanh pass:  sigmoid(x) = 0.5*tanh(0.5*x) + 0.5  on the i/f/o rows.
        th = jnp.tanh(gates * scale)
        act = jnp.where(g_mask, th, 0.5 * th + 0.5)

        i_g = act[0 * HID:1 * HID, :]
        f_g = act[1 * HID:2 * HID, :]
        g_g = act[2 * HID:3 * HID, :]
        o_g = act[3 * HID:4 * HID, :]

        c = f_g * c + i_g * g_g
        h = o_g * jnp.tanh(c)

        # 10 -> 5 output projection accumulated as VPU broadcast-FMAs.
        y = (y
             + wout[:, 2 * t:2 * t + 1] * h[0:1, :]
             + wout[:, 2 * t + 1:2 * t + 2] * h[1:2, :])

    # Lane-dense, time-major store (TB is a multiple of 128).
    o_ref[...] = jax.nn.sigmoid(y) * 9.0


@functools.partial(jax.jit, static_argnames=("tb",))
def embedding_lstm_forward(x, ew_t, whh, wout, bout_t, tb=1024):
    """x: (B, SEQ) int token ids. Returns (B, SEQ) f32."""
    B = x.shape[0]
    # TB is a multiple of 128 (lane-dense tokens/output).  Once B exceeds one
    # lane tile we use >=2 tiles so v7x's two TensorCores both get work; TB is
    # capped at `tb` so large batches amortize the ~0.35us/grid-step overhead
    # on v5e/v6e while staying far under the 16 MiB scoped-VMEM default.
    TB = max(128, min(tb, _round_up(-(-B // 2), 128)))
    Bp = _round_up(B, TB)
    nb = Bp // TB

    # Time-major tokens, zero-padded (token 0 -> zero embedding row; padded
    # batch columns are sliced away below).
    xt = jnp.zeros((SEQ, Bp), jnp.int32).at[:, :B].set(x.T.astype(jnp.int32))

    out = pl.pallas_call(
        _embedding_lstm_kernel,
        out_shape=jax.ShapeDtypeStruct((SEQ, Bp), jnp.float32),
        grid=(nb,),
        in_specs=[
            pl.BlockSpec((SEQ, TB), lambda i: (0, i)),            # tokens, time-major
            pl.BlockSpec((GATES, VOCAB + 1), lambda i: (0, 0)),   # (emb@W_ih^T | bias)^T
            pl.BlockSpec((GATES, HID), lambda i: (0, 0)),         # W_hh
            pl.BlockSpec((SEQ, SEQ * HID), lambda i: (0, 0)),     # W_out
            pl.BlockSpec((SEQ, 1), lambda i: (0, 0)),             # b_out (column)
        ],
        out_specs=pl.BlockSpec((SEQ, TB), lambda i: (0, i)),      # lane-dense output
        compiler_params=pltpu.CompilerParams(
            dimension_semantics=("parallel",)),                   # shards tiles on v7x's 2 TCs
    )(xt, ew_t, whh, wout, bout_t)
    return out[:, :B].T                                           # back to (B, SEQ)


def init_raw_params(key):
    ks = jax.random.split(key, 7)
    # nn.Embedding(100, 7, padding_idx=0): N(0,1) init, row 0 zeroed.
    emb = jax.random.normal(ks[0], (VOCAB, EMB), jnp.float32)
    emb = emb.at[0].set(0.0)
    # nn.LSTM(7 -> 2): uniform(-1/sqrt(H), 1/sqrt(H)).
    bound = 1.0 / jnp.sqrt(HID)
    w_ih = jax.random.uniform(ks[1], (GATES, EMB), jnp.float32, -bound, bound)
    w_hh = jax.random.uniform(ks[2], (GATES, HID), jnp.float32, -bound, bound)
    b_ih = jax.random.uniform(ks[3], (GATES,), jnp.float32, -bound, bound)
    b_hh = jax.random.uniform(ks[4], (GATES,), jnp.float32, -bound, bound)
    # nn.Linear(10 -> 5): uniform(-1/sqrt(10), 1/sqrt(10)).
    lb = 1.0 / jnp.sqrt(SEQ * HID)
    w_out = jax.random.uniform(ks[5], (SEQ, SEQ * HID), jnp.float32, -lb, lb)
    b_out = jax.random.uniform(ks[6], (SEQ,), jnp.float32, -lb, lb)
    return emb, w_ih, w_hh, b_ih, b_hh, w_out, b_out


def prepare_kernel_params(emb, w_ih, w_hh, b_ih, b_hh, w_out, b_out):
    emb_wih = emb @ w_ih.T                                    # (VOCAB, 4H)
    ew = jnp.concatenate([emb_wih, (b_ih + b_hh)[None, :]], axis=0)  # (VOCAB+1, 4H)
    ew_t = jnp.asarray(ew.T)                                  # (4H, VOCAB+1), bias in col VOCAB
    bout_t = b_out[:, None]                                   # (SEQ, 1)
    return ew_t, w_hh, w_out, bout_t


@jax.jit
def reference_forward(x, emb, w_ih, w_hh, b_ih, b_hh, w_out, b_out):
    """Pure-JAX mirror of the PyTorch forward (for verification)."""
    B = x.shape[0]
    e = emb[x]                                   # (B, SEQ, EMB)
    h = jnp.zeros((B, HID), jnp.float32)
    c = jnp.zeros((B, HID), jnp.float32)
    hs = []
    for t in range(SEQ):
        g = e[:, t, :] @ w_ih.T + h @ w_hh.T + b_ih + b_hh
        i_g = jax.nn.sigmoid(g[:, 0 * HID:1 * HID])
        f_g = jax.nn.sigmoid(g[:, 1 * HID:2 * HID])
        g_g = jnp.tanh(g[:, 2 * HID:3 * HID])
        o_g = jax.nn.sigmoid(g[:, 3 * HID:4 * HID])
        c = f_g * c + i_g * g_g
        h = o_g * jnp.tanh(c)
        hs.append(h)
    hcat = jnp.concatenate(hs, axis=1)           # (B, SEQ*HID), matches reshape order
    return jax.nn.sigmoid(hcat @ w_out.T + b_out) * 9.0


if __name__ == "__main__":
    key = jax.random.PRNGKey(0)
    pkey, xkey, xkey2 = jax.random.split(key, 3)

    raw = init_raw_params(pkey)
    kparams = prepare_kernel_params(*raw)

    # Small batch (single 128-wide tile).
    B = 4
    x = jax.random.randint(xkey, (B, SEQ), 0, VOCAB, dtype=jnp.int32)
    out = jax.block_until_ready(embedding_lstm_forward(x, *kparams))
    ref = jax.block_until_ready(reference_forward(x, *raw))
    assert out.shape == (B, SEQ)
    assert bool(jnp.all(jnp.isfinite(out)))
    assert bool(jnp.all(out >= 0.0)) and bool(jnp.all(out <= 9.0))
    assert bool(jnp.allclose(out, ref, atol=1e-3, rtol=1e-3)), "mismatch vs reference (B=4)"

    # Larger batch (exercises the 2-tile grid path, TB=256, grid=(2,)).
    B2 = 384
    x2 = jax.random.randint(xkey2, (B2, SEQ), 0, VOCAB, dtype=jnp.int32)
    out2 = jax.block_until_ready(embedding_lstm_forward(x2, *kparams))
    ref2 = jax.block_until_ready(reference_forward(x2, *raw))
    assert out2.shape == (B2, SEQ)
    assert bool(jnp.all(jnp.isfinite(out2)))
    assert bool(jnp.allclose(out2, ref2, atol=1e-3, rtol=1e-3)), "mismatch vs reference (B=384)"

    print("KERNEL_OK")
</pallas_src>

<mosaic_0001>
module attributes {stable_mosaic.version = 11 : i64} {
  func.func @_embedding_lstm_kernel(%arg0: i32, %arg1: memref<5x128xi32, #tpu.memory_space<vmem>>, %arg2: memref<8x101xf32, #tpu.memory_space<vmem>>, %arg3: memref<8x2xf32, #tpu.memory_space<vmem>>, %arg4: memref<5x10xf32, #tpu.memory_space<vmem>>, %arg5: memref<5x1xf32, #tpu.memory_space<vmem>>, %arg6: memref<5x128xf32, #tpu.memory_space<vmem>>) attributes {dimension_semantics = [#tpu.dimension_semantics<parallel>], iteration_bounds = array<i64: 1>, scalar_prefetch = 0 : i64, scratch_operands = 0 : i64, tpu.core_type = #tpu.core_type<tc>, window_params = [{transform_indices = @transform_0, window_bounds = array<i64: 5, 128>}, {pipeline_mode = #tpu.pipeline_mode<synchronous>, transform_indices = @transform_1, window_bounds = array<i64: 8, 101>}, {pipeline_mode = #tpu.pipeline_mode<synchronous>, transform_indices = @transform_2, window_bounds = array<i64: 8, 2>}, {pipeline_mode = #tpu.pipeline_mode<synchronous>, transform_indices = @transform_3, window_bounds = array<i64: 5, 10>}, {pipeline_mode = #tpu.pipeline_mode<synchronous>, transform_indices = @transform_4, window_bounds = array<i64: 5, 1>}, {transform_indices = @transform_5, window_bounds = array<i64: 5, 128>}]} {
    %c0 = arith.constant 0 : index
    %c0_0 = arith.constant 0 : index
    %0 = vector.load %arg1[%c0, %c0_0] : memref<5x128xi32, #tpu.memory_space<vmem>>, vector<5x128xi32>
    %c0_1 = arith.constant 0 : index
    %c0_2 = arith.constant 0 : index
    %1 = vector.load %arg2[%c0_1, %c0_2] : memref<8x101xf32, #tpu.memory_space<vmem>>, vector<8x101xf32>
    %c0_3 = arith.constant 0 : index
    %c0_4 = arith.constant 0 : index
    %2 = vector.load %arg3[%c0_3, %c0_4] : memref<8x2xf32, #tpu.memory_space<vmem>>, vector<8x2xf32>
    %c0_5 = arith.constant 0 : index
    %c0_6 = arith.constant 0 : index
    %3 = vector.load %arg4[%c0_5, %c0_6] : memref<5x10xf32, #tpu.memory_space<vmem>>, vector<5x10xf32>
    %c0_7 = arith.constant 0 : index
    %c0_8 = arith.constant 0 : index
    %4 = vector.load %arg5[%c0_7, %c0_8] : memref<5x1xf32, #tpu.memory_space<vmem>>, vector<5x1xf32>
    %5 = tpu.iota {dimensions = array<i32: 0>} : vector<101x128xi32>
    %c100_i32 = arith.constant 100 : i32
    %6 = vector.broadcast %c100_i32 : i32 to vector<101x128xi32>
    %7 = arith.cmpi eq, %5, %6 : vector<101x128xi32>
    %8 = vector.extract_strided_slice %0 {offsets = [0, 0], sizes = [1, 128], strides = [1, 1]} : vector<5x128xi32> to vector<1x128xi32>
    %9 = vector.broadcast %8 : vector<1x128xi32> to vector<101x128xi32>
    %10 = arith.cmpi eq, %5, %9 : vector<101x128xi32>
    %11 = arith.ori %10, %7 : vector<101x128xi1>
    %12 = arith.extui %11 : vector<101x128xi1> to vector<101x128xi32>
    %13 = arith.sitofp %12 : vector<101x128xi32> to vector<101x128xf32>
    %cst = arith.constant dense<0.000000e+00> : vector<8x128xf32>
    %14 = tpu.matmul %1, %13, %cst {dimension_numbers = #tpu.dot_dimension_numbers<[1], [0], [0], [1], [0, 0, 1, 1], [], []>} : vector<8x101xf32>, vector<101x128xf32>, vector<8x128xf32> -> vector<8x128xf32>
    %15 = vector.extract_strided_slice %0 {offsets = [1, 0], sizes = [1, 128], strides = [1, 1]} : vector<5x128xi32> to vector<1x128xi32>
    %16 = vector.broadcast %15 : vector<1x128xi32> to vector<101x128xi32>
    %17 = arith.cmpi eq, %5, %16 : vector<101x128xi32>
    %18 = arith.ori %17, %7 : vector<101x128xi1>
    %19 = arith.extui %18 : vector<101x128xi1> to vector<101x128xi32>
    %20 = arith.sitofp %19 : vector<101x128xi32> to vector<101x128xf32>
    %cst_9 = arith.constant dense<0.000000e+00> : vector<8x128xf32>
    %21 = tpu.matmul %1, %20, %cst_9 {dimension_numbers = #tpu.dot_dimension_numbers<[1], [0], [0], [1], [0, 0, 1, 1], [], []>} : vector<8x101xf32>, vector<101x128xf32>, vector<8x128xf32> -> vector<8x128xf32>
    %22 = vector.extract_strided_slice %0 {offsets = [2, 0], sizes = [1, 128], strides = [1, 1]} : vector<5x128xi32> to vector<1x128xi32>
    %23 = vector.broadcast %22 : vector<1x128xi32> to vector<101x128xi32>
    %24 = arith.cmpi eq, %5, %23 : vector<101x128xi32>
    %25 = arith.ori %24, %7 : vector<101x128xi1>
    %26 = arith.extui %25 : vector<101x128xi1> to vector<101x128xi32>
    %27 = arith.sitofp %26 : vector<101x128xi32> to vector<101x128xf32>
    %cst_10 = arith.constant dense<0.000000e+00> : vector<8x128xf32>
    %28 = tpu.matmul %1, %27, %cst_10 {dimension_numbers = #tpu.dot_dimension_numbers<[1], [0], [0], [1], [0, 0, 1, 1], [], []>} : vector<8x101xf32>, vector<101x128xf32>, vector<8x128xf32> -> vector<8x128xf32>
    %29 = vector.extract_strided_slice %0 {offsets = [3, 0], sizes = [1, 128], strides = [1, 1]} : vector<5x128xi32> to vector<1x128xi32>
    %30 = vector.broadcast %29 : vector<1x128xi32> to vector<101x128xi32>
    %31 = arith.cmpi eq, %5, %30 : vector<101x128xi32>
    %32 = arith.ori %31, %7 : vector<101x128xi1>
    %33 = arith.extui %32 : vector<101x128xi1> to vector<101x128xi32>
    %34 = arith.sitofp %33 : vector<101x128xi32> to vector<101x128xf32>
    %cst_11 = arith.constant dense<0.000000e+00> : vector<8x128xf32>
    %35 = tpu.matmul %1, %34, %cst_11 {dimension_numbers = #tpu.dot_dimension_numbers<[1], [0], [0], [1], [0, 0, 1, 1], [], []>} : vector<8x101xf32>, vector<101x128xf32>, vector<8x128xf32> -> vector<8x128xf32>
    %36 = vector.extract_strided_slice %0 {offsets = [4, 0], sizes = [1, 128], strides = [1, 1]} : vector<5x128xi32> to vector<1x128xi32>
    %37 = vector.broadcast %36 : vector<1x128xi32> to vector<101x128xi32>
    %38 = arith.cmpi eq, %5, %37 : vector<101x128xi32>
    %39 = arith.ori %38, %7 : vector<101x128xi1>
    %40 = arith.extui %39 : vector<101x128xi1> to vector<101x128xi32>
    %41 = arith.sitofp %40 : vector<101x128xi32> to vector<101x128xf32>
    %cst_12 = arith.constant dense<0.000000e+00> : vector<8x128xf32>
    %42 = tpu.matmul %1, %41, %cst_12 {dimension_numbers = #tpu.dot_dimension_numbers<[1], [0], [0], [1], [0, 0, 1, 1], [], []>} : vector<8x101xf32>, vector<101x128xf32>, vector<8x128xf32> -> vector<8x128xf32>
    %43 = tpu.iota {dimensions = array<i32: 0>} : vector<8x128xi32>
    %c4_i32 = arith.constant 4 : i32
    %44 = vector.broadcast %c4_i32 : i32 to vector<8x128xi32>
    %45 = arith.cmpi sge, %43, %44 : vector<8x128xi32>
    %c6_i32 = arith.constant 6 : i32
    %46 = vector.broadcast %c6_i32 : i32 to vector<8x128xi32>
    %47 = arith.cmpi slt, %43, %46 : vector<8x128xi32>
    %48 = arith.andi %45, %47 : vector<8x128xi1>
    %cst_13 = arith.constant 1.000000e+00 : f32
    %cst_14 = arith.constant 5.000000e-01 : f32
    %49 = vector.broadcast %cst_13 : f32 to vector<8x128xf32>
    %50 = vector.broadcast %cst_14 : f32 to vector<8x128xf32>
    %51 = arith.select %48, %49, %50 : vector<8x128xi1>, vector<8x128xf32>
    %52 = vector.extract_strided_slice %2 {offsets = [0, 0], sizes = [8, 1], strides = [1, 1]} : vector<8x2xf32> to vector<8x1xf32>
    %53 = vector.shape_cast %52 : vector<8x1xf32> to vector<8x1xf32>
    %54 = vector.broadcast %53 : vector<8x1xf32> to vector<8x128xf32>
    %55 = vector.extract_strided_slice %2 {offsets = [0, 1], sizes = [8, 1], strides = [1, 1]} : vector<8x2xf32> to vector<8x1xf32>
    %56 = vector.shape_cast %55 : vector<8x1xf32> to vector<8x1xf32>
    %57 = vector.broadcast %56 : vector<8x1xf32> to vector<8x128xf32>
    %cst_15 = arith.constant 0.000000e+00 : f32
    %58 = vector.broadcast %cst_15 : f32 to vector<2x128xf32>
    %cst_16 = arith.constant 0.000000e+00 : f32
    %59 = vector.broadcast %cst_16 : f32 to vector<2x128xf32>
    %60 = vector.shape_cast %4 : vector<5x1xf32> to vector<5x1xf32>
    %61 = vector.broadcast %60 : vector<5x1xf32> to vector<5x128xf32>
    %62 = vector.extract_strided_slice %58 {offsets = [0, 0], sizes = [1, 128], strides = [1, 1]} : vector<2x128xf32> to vector<1x128xf32>
    %63 = vector.broadcast %62 : vector<1x128xf32> to vector<8x128xf32>
    %64 = arith.mulf %54, %63 : vector<8x128xf32>
    %65 = arith.addf %14, %64 : vector<8x128xf32>
    %66 = vector.extract_strided_slice %58 {offsets = [1, 0], sizes = [1, 128], strides = [1, 1]} : vector<2x128xf32> to vector<1x128xf32>
    %67 = vector.broadcast %66 : vector<1x128xf32> to vector<8x128xf32>
    %68 = arith.mulf %57, %67 : vector<8x128xf32>
    %69 = arith.addf %65, %68 : vector<8x128xf32>
    %70 = arith.mulf %69, %51 : vector<8x128xf32>
    %71 = math.tanh %70 : vector<8x128xf32>
    %cst_17 = arith.constant 5.000000e-01 : f32
    %72 = vector.broadcast %cst_17 : f32 to vector<8x128xf32>
    %73 = arith.mulf %72, %71 : vector<8x128xf32>
    %cst_18 = arith.constant 5.000000e-01 : f32
    %74 = vector.broadcast %cst_18 : f32 to vector<8x128xf32>
    %75 = arith.addf %73, %74 : vector<8x128xf32>
    %76 = arith.select %48, %71, %75 : vector<8x128xi1>, vector<8x128xf32>
    %77 = vector.extract_strided_slice %76 {offsets = [0, 0], sizes = [2, 128], strides = [1, 1]} : vector<8x128xf32> to vector<2x128xf32>
    %78 = vector.extract_strided_slice %76 {offsets = [2, 0], sizes = [2, 128], strides = [1, 1]} : vector<8x128xf32> to vector<2x128xf32>
    %79 = vector.extract_strided_slice %76 {offsets = [4, 0], sizes = [2, 128], strides = [1, 1]} : vector<8x128xf32> to vector<2x128xf32>
    %80 = vector.extract_strided_slice %76 {offsets = [6, 0], sizes = [2, 128], strides = [1, 1]} : vector<8x128xf32> to vector<2x128xf32>
    %81 = arith.mulf %78, %59 : vector<2x128xf32>
    %82 = arith.mulf %77, %79 : vector<2x128xf32>
    %83 = arith.addf %81, %82 : vector<2x128xf32>
    %84 = math.tanh %83 : vector<2x128xf32>
    %85 = arith.mulf %80, %84 : vector<2x128xf32>
    %86 = vector.extract_strided_slice %3 {offsets = [0, 0], sizes = [5, 1], strides = [1, 1]} : vector<5x10xf32> to vector<5x1xf32>
    %87 = vector.extract_strided_slice %85 {offsets = [0, 0], sizes = [1, 128], strides = [1, 1]} : vector<2x128xf32> to vector<1x128xf32>
    %88 = vector.broadcast %86 : vector<5x1xf32> to vector<5x128xf32>
    %89 = vector.broadcast %87 : vector<1x128xf32> to vector<5x128xf32>
    %90 = arith.mulf %88, %89 : vector<5x128xf32>
    %91 = arith.addf %61, %90 : vector<5x128xf32>
    %92 = vector.extract_strided_slice %3 {offsets = [0, 1], sizes = [5, 1], strides = [1, 1]} : vector<5x10xf32> to vector<5x1xf32>
    %93 = vector.extract_strided_slice %85 {offsets = [1, 0], sizes = [1, 128], strides = [1, 1]} : vector<2x128xf32> to vector<1x128xf32>
    %94 = vector.broadcast %92 : vector<5x1xf32> to vector<5x128xf32>
    %95 = vector.broadcast %93 : vector<1x128xf32> to vector<5x128xf32>
    %96 = arith.mulf %94, %95 : vector<5x128xf32>
    %97 = arith.addf %91, %96 : vector<5x128xf32>
    %98 = vector.extract_strided_slice %85 {offsets = [0, 0], sizes = [1, 128], strides = [1, 1]} : vector<2x128xf32> to vector<1x128xf32>
    %99 = vector.broadcast %98 : vector<1x128xf32> to vector<8x128xf32>
    %100 = arith.mulf %54, %99 : vector<8x128xf32>
    %101 = arith.addf %21, %100 : vector<8x128xf32>
    %102 = vector.extract_strided_slice %85 {offsets = [1, 0], sizes = [1, 128], strides = [1, 1]} : vector<2x128xf32> to vector<1x128xf32>
    %103 = vector.broadcast %102 : vector<1x128xf32> to vector<8x128xf32>
    %104 = arith.mulf %57, %103 : vector<8x128xf32>
    %105 = arith.addf %101, %104 : vector<8x128xf32>
    %106 = arith.mulf %105, %51 : vector<8x128xf32>
    %107 = math.tanh %106 : vector<8x128xf32>
    %cst_19 = arith.constant 5.000000e-01 : f32
    %108 = vector.broadcast %cst_19 : f32 to vector<8x128xf32>
    %109 = arith.mulf %108, %107 : vector<8x128xf32>
    %cst_20 = arith.constant 5.000000e-01 : f32
    %110 = vector.broadcast %cst_20 : f32 to vector<8x128xf32>
    %111 = arith.addf %109, %110 : vector<8x128xf32>
    %112 = arith.select %48, %107, %111 : vector<8x128xi1>, vector<8x128xf32>
    %113 = vector.extract_strided_slice %112 {offsets = [0, 0], sizes = [2, 128], strides = [1, 1]} : vector<8x128xf32> to vector<2x128xf32>
    %114 = vector.extract_strided_slice %112 {offsets = [2, 0], sizes = [2, 128], strides = [1, 1]} : vector<8x128xf32> to vector<2x128xf32>
    %115 = vector.extract_strided_slice %112 {offsets = [4, 0], sizes = [2, 128], strides = [1, 1]} : vector<8x128xf32> to vector<2x128xf32>
    %116 = vector.extract_strided_slice %112 {offsets = [6, 0], sizes = [2, 128], strides = [1, 1]} : vector<8x128xf32> to vector<2x128xf32>
    %117 = arith.mulf %114, %83 : vector<2x128xf32>
    %118 = arith.mulf %113, %115 : vector<2x128xf32>
    %119 = arith.addf %117, %118 : vector<2x128xf32>
    %120 = math.tanh %119 : vector<2x128xf32>
    %121 = arith.mulf %116, %120 : vector<2x128xf32>
    %122 = vector.extract_strided_slice %3 {offsets = [0, 2], sizes = [5, 1], strides = [1, 1]} : vector<5x10xf32> to vector<5x1xf32>
    %123 = vector.extract_strided_slice %121 {offsets = [0, 0], sizes = [1, 128], strides = [1, 1]} : vector<2x128xf32> to vector<1x128xf32>
    %124 = vector.broadcast %122 : vector<5x1xf32> to vector<5x128xf32>
    %125 = vector.broadcast %123 : vector<1x128xf32> to vector<5x128xf32>
    %126 = arith.mulf %124, %125 : vector<5x128xf32>
    %127 = arith.addf %97, %126 : vector<5x128xf32>
    %128 = vector.extract_strided_slice %3 {offsets = [0, 3], sizes = [5, 1], strides = [1, 1]} : vector<5x10xf32> to vector<5x1xf32>
    %129 = vector.extract_strided_slice %121 {offsets = [1, 0], sizes = [1, 128], strides = [1, 1]} : vector<2x128xf32> to vector<1x128xf32>
    %130 = vector.broadcast %128 : vector<5x1xf32> to vector<5x128xf32>
    %131 = vector.broadcast %129 : vector<1x128xf32> to vector<5x128xf32>
    %132 = arith.mulf %130, %131 : vector<5x128xf32>
    %133 = arith.addf %127, %132 : vector<5x128xf32>
    %134 = vector.extract_strided_slice %121 {offsets = [0, 0], sizes = [1, 128], strides = [1, 1]} : vector<2x128xf32> to vector<1x128xf32>
    %135 = vector.broadcast %134 : vector<1x128xf32> to vector<8x128xf32>
    %136 = arith.mulf %54, %135 : vector<8x128xf32>
    %137 = arith.addf %28, %136 : vector<8x128xf32>
    %138 = vector.extract_strided_slice %121 {offsets = [1, 0], sizes = [1, 128], strides = [1, 1]} : vector<2x128xf32> to vector<1x128xf32>
    %139 = vector.broadcast %138 : vector<1x128xf32> to vector<8x128xf32>
    %140 = arith.mulf %57, %139 : vector<8x128xf32>
    %141 = arith.addf %137, %140 : vector<8x128xf32>
    %142 = arith.mulf %141, %51 : vector<8x128xf32>
    %143 = math.tanh %142 : vector<8x128xf32>
    %cst_21 = arith.constant 5.000000e-01 : f32
    %144 = vector.broadcast %cst_21 : f32 to vector<8x128xf32>
    %145 = arith.mulf %144, %143 : vector<8x128xf32>
    %cst_22 = arith.constant 5.000000e-01 : f32
    %146 = vector.broadcast %cst_22 : f32 to vector<8x128xf32>
    %147 = arith.addf %145, %146 : vector<8x128xf32>
    %148 = arith.select %48, %143, %147 : vector<8x128xi1>, vector<8x128xf32>
    %149 = vector.extract_strided_slice %148 {offsets = [0, 0], sizes = [2, 128], strides = [1, 1]} : vector<8x128xf32> to vector<2x128xf32>
    %150 = vector.extract_strided_slice %148 {offsets = [2, 0], sizes = [2, 128], strides = [1, 1]} : vector<8x128xf32> to vector<2x128xf32>
    %151 = vector.extract_strided_slice %148 {offsets = [4, 0], sizes = [2, 128], strides = [1, 1]} : vector<8x128xf32> to vector<2x128xf32>
    %152 = vector.extract_strided_slice %148 {offsets = [6, 0], sizes = [2, 128], strides = [1, 1]} : vector<8x128xf32> to vector<2x128xf32>
    %153 = arith.mulf %150, %119 : vector<2x128xf32>
    %154 = arith.mulf %149, %151 : vector<2x128xf32>
    %155 = arith.addf %153, %154 : vector<2x128xf32>
    %156 = math.tanh %155 : vector<2x128xf32>
    %157 = arith.mulf %152, %156 : vector<2x128xf32>
    %158 = vector.extract_strided_slice %3 {offsets = [0, 4], sizes = [5, 1], strides = [1, 1]} : vector<5x10xf32> to vector<5x1xf32>
    %159 = vector.extract_strided_slice %157 {offsets = [0, 0], sizes = [1, 128], strides = [1, 1]} : vector<2x128xf32> to vector<1x128xf32>
    %160 = vector.broadcast %158 : vector<5x1xf32> to vector<5x128xf32>
    %161 = vector.broadcast %159 : vector<1x128xf32> to vector<5x128xf32>
    %162 = arith.mulf %160, %161 : vector<5x128xf32>
    %163 = arith.addf %133, %162 : vector<5x128xf32>
    %164 = vector.extract_strided_slice %3 {offsets = [0, 5], sizes = [5, 1], strides = [1, 1]} : vector<5x10xf32> to vector<5x1xf32>
    %165 = vector.extract_strided_slice %157 {offsets = [1, 0], sizes = [1, 128], strides = [1, 1]} : vector<2x128xf32> to vector<1x128xf32>
    %166 = vector.broadcast %164 : vector<5x1xf32> to vector<5x128xf32>
    %167 = vector.broadcast %165 : vector<1x128xf32> to vector<5x128xf32>
    %168 = arith.mulf %166, %167 : vector<5x128xf32>
    %169 = arith.addf %163, %168 : vector<5x128xf32>
    %170 = vector.extract_strided_slice %157 {offsets = [0, 0], sizes = [1, 128], strides = [1, 1]} : vector<2x128xf32> to vector<1x128xf32>
    %171 = vector.broadcast %170 : vector<1x128xf32> to vector<8x128xf32>
    %172 = arith.mulf %54, %171 : vector<8x128xf32>
    %173 = arith.addf %35, %172 : vector<8x128xf32>
    %174 = vector.extract_strided_slice %157 {offsets = [1, 0], sizes = [1, 128], strides = [1, 1]} : vector<2x128xf32> to vector<1x128xf32>
    %175 = vector.broadcast %174 : vector<1x128xf32> to vector<8x128xf32>
    %176 = arith.mulf %57, %175 : vector<8x128xf32>
    %177 = arith.addf %173, %176 : vector<8x128xf32>
    %178 = arith.mulf %177, %51 : vector<8x128xf32>
    %179 = math.tanh %178 : vector<8x128xf32>
    %cst_23 = arith.constant 5.000000e-01 : f32
    %180 = vector.broadcast %cst_23 : f32 to vector<8x128xf32>
    %181 = arith.mulf %180, %179 : vector<8x128xf32>
    %cst_24 = arith.constant 5.000000e-01 : f32
    %182 = vector.broadcast %cst_24 : f32 to vector<8x128xf32>
    %183 = arith.addf %181, %182 : vector<8x128xf32>
    %184 = arith.select %48, %179, %183 : vector<8x128xi1>, vector<8x128xf32>
    %185 = vector.extract_strided_slice %184 {offsets = [0, 0], sizes = [2, 128], strides = [1, 1]} : vector<8x128xf32> to vector<2x128xf32>
    %186 = vector.extract_strided_slice %184 {offsets = [2, 0], sizes = [2, 128], strides = [1, 1]} : vector<8x128xf32> to vector<2x128xf32>
    %187 = vector.extract_strided_slice %184 {offsets = [4, 0], sizes = [2, 128], strides = [1, 1]} : vector<8x128xf32> to vector<2x128xf32>
    %188 = vector.extract_strided_slice %184 {offsets = [6, 0], sizes = [2, 128], strides = [1, 1]} : vector<8x128xf32> to vector<2x128xf32>
    %189 = arith.mulf %186, %155 : vector<2x128xf32>
    %190 = arith.mulf %185, %187 : vector<2x128xf32>
    %191 = arith.addf %189, %190 : vector<2x128xf32>
    %192 = math.tanh %191 : vector<2x128xf32>
    %193 = arith.mulf %188, %192 : vector<2x128xf32>
    %194 = vector.extract_strided_slice %3 {offsets = [0, 6], sizes = [5, 1], strides = [1, 1]} : vector<5x10xf32> to vector<5x1xf32>
    %195 = vector.extract_strided_slice %193 {offsets = [0, 0], sizes = [1, 128], strides = [1, 1]} : vector<2x128xf32> to vector<1x128xf32>
    %196 = vector.broadcast %194 : vector<5x1xf32> to vector<5x128xf32>
    %197 = vector.broadcast %195 : vector<1x128xf32> to vector<5x128xf32>
    %198 = arith.mulf %196, %197 : vector<5x128xf32>
    %199 = arith.addf %169, %198 : vector<5x128xf32>
    %200 = vector.extract_strided_slice %3 {offsets = [0, 7], sizes = [5, 1], strides = [1, 1]} : vector<5x10xf32> to vector<5x1xf32>
    %201 = vector.extract_strided_slice %193 {offsets = [1, 0], sizes = [1, 128], strides = [1, 1]} : vector<2x128xf32> to vector<1x128xf32>
    %202 = vector.broadcast %200 : vector<5x1xf32> to vector<5x128xf32>
    %203 = vector.broadcast %201 : vector<1x128xf32> to vector<5x128xf32>
    %204 = arith.mulf %202, %203 : vector<5x128xf32>
    %205 = arith.addf %199, %204 : vector<5x128xf32>
    %206 = vector.extract_strided_slice %193 {offsets = [0, 0], sizes = [1, 128], strides = [1, 1]} : vector<2x128xf32> to vector<1x128xf32>
    %207 = vector.broadcast %206 : vector<1x128xf32> to vector<8x128xf32>
    %208 = arith.mulf %54, %207 : vector<8x128xf32>
    %209 = arith.addf %42, %208 : vector<8x128xf32>
    %210 = vector.extract_strided_slice %193 {offsets = [1, 0], sizes = [1, 128], strides = [1, 1]} : vector<2x128xf32> to vector<1x128xf32>
    %211 = vector.broadcast %210 : vector<1x128xf32> to vector<8x128xf32>
    %212 = arith.mulf %57, %211 : vector<8x128xf32>
    %213 = arith.addf %209, %212 : vector<8x128xf32>
    %214 = arith.mulf %213, %51 : vector<8x128xf32>
    %215 = math.tanh %214 : vector<8x128xf32>
    %cst_25 = arith.constant 5.000000e-01 : f32
    %216 = vector.broadcast %cst_25 : f32 to vector<8x128xf32>
    %217 = arith.mulf %216, %215 : vector<8x128xf32>
    %cst_26 = arith.constant 5.000000e-01 : f32
    %218 = vector.broadcast %cst_26 : f32 to vector<8x128xf32>
    %219 = arith.addf %217, %218 : vector<8x128xf32>
    %220 = arith.select %48, %215, %219 : vector<8x128xi1>, vector<8x128xf32>
    %221 = vector.extract_strided_slice %220 {offsets = [0, 0], sizes = [2, 128], strides = [1, 1]} : vector<8x128xf32> to vector<2x128xf32>
    %222 = vector.extract_strided_slice %220 {offsets = [2, 0], sizes = [2, 128], strides = [1, 1]} : vector<8x128xf32> to vector<2x128xf32>
    %223 = vector.extract_strided_slice %220 {offsets = [4, 0], sizes = [2, 128], strides = [1, 1]} : vector<8x128xf32> to vector<2x128xf32>
    %224 = vector.extract_strided_slice %220 {offsets = [6, 0], sizes = [2, 128], strides = [1, 1]} : vector<8x128xf32> to vector<2x128xf32>
    %225 = arith.mulf %222, %191 : vector<2x128xf32>
    %226 = arith.mulf %221, %223 : vector<2x128xf32>
    %227 = arith.addf %225, %226 : vector<2x128xf32>
    %228 = math.tanh %227 : vector<2x128xf32>
    %229 = arith.mulf %224, %228 : vector<2x128xf32>
    %230 = vector.extract_strided_slice %3 {offsets = [0, 8], sizes = [5, 1], strides = [1, 1]} : vector<5x10xf32> to vector<5x1xf32>
    %231 = vector.extract_strided_slice %229 {offsets = [0, 0], sizes = [1, 128], strides = [1, 1]} : vector<2x128xf32> to vector<1x128xf32>
    %232 = vector.broadcast %230 : vector<5x1xf32> to vector<5x128xf32>
    %233 = vector.broadcast %231 : vector<1x128xf32> to vector<5x128xf32>
    %234 = arith.mulf %232, %233 : vector<5x128xf32>
    %235 = arith.addf %205, %234 : vector<5x128xf32>
    %236 = vector.extract_strided_slice %3 {offsets = [0, 9], sizes = [5, 1], strides = [1, 1]} : vector<5x10xf32> to vector<5x1xf32>
    %237 = vector.extract_strided_slice %229 {offsets = [1, 0], sizes = [1, 128], strides = [1, 1]} : vector<2x128xf32> to vector<1x128xf32>
    %238 = vector.broadcast %236 : vector<5x1xf32> to vector<5x128xf32>
    %239 = vector.broadcast %237 : vector<1x128xf32> to vector<5x128xf32>
    %240 = arith.mulf %238, %239 : vector<5x128xf32>
    %241 = arith.addf %235, %240 : vector<5x128xf32>
    %242 = arith.negf %241 : vector<5x128xf32>
    %243 = math.exp %242 : vector<5x128xf32>
    %cst_27 = arith.constant 1.000000e+00 : f32
    %244 = vector.broadcast %cst_27 : f32 to vector<5x128xf32>
    %245 = arith.addf %244, %243 : vector<5x128xf32>
    %246 = arith.divf %244, %245 : vector<5x128xf32>
    %cst_28 = arith.constant 9.000000e+00 : f32
    %247 = vector.broadcast %cst_28 : f32 to vector<5x128xf32>
    %248 = arith.mulf %246, %247 : vector<5x128xf32>
    %c0_29 = arith.constant 0 : index
    %c0_30 = arith.constant 0 : index
    %249 = vector.load %arg6[%c0_29, %c0_30] : memref<5x128xf32, #tpu.memory_space<vmem>>, vector<5x128xf32>
    tpu.vector_store %arg6[%c0_29, %c0_30], %248 {strides = array<i32>} : memref<5x128xf32, #tpu.memory_space<vmem>>, vector<5x128xf32>,
    return
  }
  func.func @transform_0(%arg0: i32) -> (i32, i32) {
    %c0_i32 = arith.constant 0 : i32
    %c0_i32_0 = arith.constant 0 : i32
    return %c0_i32, %arg0 : i32, i32
  }
  func.func @transform_1(%arg0: i32) -> (i32, i32) {
    %c0_i32 = arith.constant 0 : i32
    %c0_i32_0 = arith.constant 0 : i32
    %c0_i32_1 = arith.constant 0 : i32
    return %c0_i32, %c0_i32_0 : i32, i32
  }
  func.func @transform_2(%arg0: i32) -> (i32, i32) {
    %c0_i32 = arith.constant 0 : i32
    %c0_i32_0 = arith.constant 0 : i32
    %c0_i32_1 = arith.constant 0 : i32
    return %c0_i32, %c0_i32_0 : i32, i32
  }
  func.func @transform_3(%arg0: i32) -> (i32, i32) {
    %c0_i32 = arith.constant 0 : i32
    %c0_i32_0 = arith.constant 0 : i32
    %c0_i32_1 = arith.constant 0 : i32
    return %c0_i32, %c0_i32_0 : i32, i32
  }
  func.func @transform_4(%arg0: i32) -> (i32, i32) {
    %c0_i32 = arith.constant 0 : i32
    %c0_i32_0 = arith.constant 0 : i32
    %c0_i32_1 = arith.constant 0 : i32
    return %c0_i32, %c0_i32_0 : i32, i32
  }
  func.func @transform_5(%arg0: i32) -> (i32, i32) {
    %c0_i32 = arith.constant 0 : i32
    %c0_i32_0 = arith.constant 0 : i32
    return %c0_i32, %arg0 : i32, i32
  }
}

</mosaic_0001>

<llo_original>
// kernel: embedding_lstm_forward.1
$region0: #{embedding_lstm_forward.1}
  #allocation0 [shape = 'u32[]', space=smem, size = 0x4, offset = 0x4, fixed_abs, tag = 'smem constant byte address 0x4 - core index']
  #allocation1 [shape = 'u32[144,128]{1,0:T(1,128)}', space=vmem, size = 0x12000, scoped, tag = 'internal scratch']
  %s0 = inlined_call_operand.vmem [shape: s32[5,128], index: 0, kind: input, shape index: {}]
  %s1 = inlined_call_operand.vmem [shape: f32[8,101], index: 1, kind: input, shape index: {}]
  %s2 = inlined_call_operand.vmem [shape: f32[8,2], index: 2, kind: input, shape index: {}]
  %s3 = inlined_call_operand.vmem [shape: f32[5,10], index: 3, kind: input, shape index: {}]
  %s4 = inlined_call_operand.vmem [shape: f32[5,1], index: 4, kind: input, shape index: {}]
  %s5 = inlined_call_operand.vmem [shape: f32[5,128], index: 5, kind: output, shape index: {}]
  %s6 = sld [smem:[#allocation0]]
  $region30: #{embedding_lstm_forward.1} parent=0
    _
  %s8 = ssub.s32 1, %s6
  %s9 = scalar_select 0, %s8, %s6
  // Predicated region
  $region2: #{embedding_lstm_forward.1} parent=0 // pred_check
    _
  $region3: #{embedding_lstm_forward.1} parent=0 // pred_check_branch
    %11 = sbr.rel (0) target = $region5
  $region4: #{embedding_lstm_forward.1} parent=0 // pred_region
    _
  $region5: #{embedding_lstm_forward.1} parent=0 // pred_fallthru
    _
  // Predicated region
  $region6: #{embedding_lstm_forward.1} parent=0 // pred_check
    _
  $region7: #{embedding_lstm_forward.1} parent=0 // pred_check_branch
    %13 = sbr.rel (0) target = $region9
  $region8: #{embedding_lstm_forward.1} parent=0 // pred_region
    _
  $region9: #{embedding_lstm_forward.1} parent=0 // pred_fallthru
    _
  // Predicated region
  $region10: #{embedding_lstm_forward.1} parent=0 // pred_check
    _
  $region11: #{embedding_lstm_forward.1} parent=0 // pred_check_branch
    %15 = sbr.rel (0) target = $region13
  $region12: #{embedding_lstm_forward.1} parent=0 // pred_region
    _
  $region13: #{embedding_lstm_forward.1} parent=0 // pred_fallthru
    _
  // Predicated region
  $region14: #{embedding_lstm_forward.1} parent=0 // pred_check
    _
  $region15: #{embedding_lstm_forward.1} parent=0 // pred_check_branch
    %17 = sbr.rel (0) target = $region17
  $region16: #{embedding_lstm_forward.1} parent=0 // pred_region
    _
  $region17: #{embedding_lstm_forward.1} parent=0 // pred_fallthru
    _
  // Predicated region
  $region18: #{embedding_lstm_forward.1} parent=0 // pred_check
    _
  $region19: #{embedding_lstm_forward.1} parent=0 // pred_check_branch
    %19 = sbr.rel (0) target = $region21
  $region20: #{embedding_lstm_forward.1} parent=0 // pred_region
    _
  $region21: #{embedding_lstm_forward.1} parent=0 // pred_fallthru
    _
  %v20 = vld [vmem:[%s0] sm:$0x1f]
  %v21 = vld [vmem:[%s1] sm:$0xff]
  %v22 = vld [vmem:[%s2] sm:$0xff]
  %v23 = vld [vmem:[%s3] sm:$0x1f]
  %v24 = vld [vmem:[%s4] sm:$0x1f]
  %v25 = vlaneseq
  %v26 = vshrl.u32 %v25, 7
  %v27 = vadd.s32 %v26, 8
  %v28 = vadd.s32 %v26, 16
  %v29 = vadd.s32 %v26, 24
  %v30 = vadd.s32 %v26, 32
  %v31 = vadd.s32 %v26, 40
  %v32 = vadd.s32 %v26, 48
  %v33 = vadd.s32 %v26, 56
  %v34 = vadd.s32 %v26, 64
  %v35 = vadd.s32 %v26, 72
  %v36 = vadd.s32 %v26, 80
  %v37 = vadd.s32 %v26, 88
  %v38 = vadd.s32 %v26, 96
  %vm39 = vcmp.eq.s32.totalorder %v26, 100
  %vm40 = vcmp.eq.s32.totalorder %v27, 100
  %vm41 = vcmp.eq.s32.totalorder %v28, 100
  %vm42 = vcmp.eq.s32.totalorder %v29, 100
  %vm43 = vcmp.eq.s32.totalorder %v30, 100
  %vm44 = vcmp.eq.s32.totalorder %v31, 100
  %vm45 = vcmp.eq.s32.totalorder %v32, 100
  %vm46 = vcmp.eq.s32.totalorder %v33, 100
  %vm47 = vcmp.eq.s32.totalorder %v34, 100
  %vm48 = vcmp.eq.s32.totalorder %v35, 100
  %vm49 = vcmp.eq.s32.totalorder %v36, 100
  %vm50 = vcmp.eq.s32.totalorder %v37, 100
  %vm51 = vcmp.eq.s32.totalorder %v38, 100
  %v52 = vlaneseq
  %v53 = vshrl.u32 %v52, 7
  %v54 = vsub.s32 0, %v53
  %v55 = vrot.slane %v20, %v54
  %vm56 = vcmp.eq.s32.totalorder %v26, %v55
  %vm57 = vcmp.eq.s32.totalorder %v27, %v55
  %vm58 = vcmp.eq.s32.totalorder %v28, %v55
  %vm59 = vcmp.eq.s32.totalorder %v29, %v55
  %vm60 = vcmp.eq.s32.totalorder %v30, %v55
  %vm61 = vcmp.eq.s32.totalorder %v31, %v55
  %vm62 = vcmp.eq.s32.totalorder %v32, %v55
  %vm63 = vcmp.eq.s32.totalorder %v33, %v55
  %vm64 = vcmp.eq.s32.totalorder %v34, %v55
  %vm65 = vcmp.eq.s32.totalorder %v35, %v55
  %vm66 = vcmp.eq.s32.totalorder %v36, %v55
  %vm67 = vcmp.eq.s32.totalorder %v37, %v55
  %vm68 = vcmp.eq.s32.totalorder %v38, %v55
  %vm69 = vmor %vm56, %vm39
  %vm70 = vmor %vm57, %vm40
  %vm71 = vmor %vm58, %vm41
  %vm72 = vmor %vm59, %vm42
  %vm73 = vmor %vm60, %vm43
  %vm74 = vmor %vm61, %vm44
  %vm75 = vmor %vm62, %vm45
  %vm76 = vmor %vm63, %vm46
  %vm77 = vmor %vm64, %vm47
  %vm78 = vmor %vm65, %vm48
  %vm79 = vmor %vm66, %vm49
  %vm80 = vmor %vm67, %vm50
  %vm81 = vmor %vm68, %vm51
  %v82 = vsel %vm69, 1, 0
  %v83 = vsel %vm70, 1, 0
  %v84 = vsel %vm71, 1, 0
  %v85 = vsel %vm72, 1, 0
  %v86 = vsel %vm73, 1, 0
  %v87 = vsel %vm74, 1, 0
  %v88 = vsel %vm75, 1, 0
  %v89 = vsel %vm76, 1, 0
  %v90 = vsel %vm77, 1, 0
  %v91 = vsel %vm78, 1, 0
  %v92 = vsel %vm79, 1, 0
  %v93 = vsel %vm80, 1, 0
  %v94 = vsel %vm81, 1, 0
  %v95 = vcvt.s32.f32 %v82
  %v96 = vcvt.s32.f32 %v83
  %v97 = vcvt.s32.f32 %v84
  %v98 = vcvt.s32.f32 %v85
  %v99 = vcvt.s32.f32 %v86
  %v100 = vcvt.s32.f32 %v87
  %v101 = vcvt.s32.f32 %v88
  %v102 = vcvt.s32.f32 %v89
  %v103 = vcvt.s32.f32 %v90
  %v104 = vcvt.s32.f32 %v91
  %v105 = vcvt.s32.f32 %v92
  %v106 = vcvt.s32.f32 %v93
  %v107 = vcvt.s32.f32 %v94
  %v108 = vlaneseq
  %v109 = vshrl.u32 %v108, 7
  %v110 = vsub.s32 1, %v109
  %v111 = vrot.slane %v20, %v110
  %vm112 = vcmp.eq.s32.totalorder %v26, %v111
  %vm113 = vcmp.eq.s32.totalorder %v27, %v111
  %vm114 = vcmp.eq.s32.totalorder %v28, %v111
  %vm115 = vcmp.eq.s32.totalorder %v29, %v111
  %vm116 = vcmp.eq.s32.totalorder %v30, %v111
  %vm117 = vcmp.eq.s32.totalorder %v31, %v111
  %vm118 = vcmp.eq.s32.totalorder %v32, %v111
  %vm119 = vcmp.eq.s32.totalorder %v33, %v111
  %vm120 = vcmp.eq.s32.totalorder %v34, %v111
  %vm121 = vcmp.eq.s32.totalorder %v35, %v111
  %vm122 = vcmp.eq.s32.totalorder %v36, %v111
  %vm123 = vcmp.eq.s32.totalorder %v37, %v111
  %vm124 = vcmp.eq.s32.totalorder %v38, %v111
  %vm125 = vmor %vm112, %vm39
  %vm126 = vmor %vm113, %vm40
  %vm127 = vmor %vm114, %vm41
  %vm128 = vmor %vm115, %vm42
  %vm129 = vmor %vm116, %vm43
  %vm130 = vmor %vm117, %vm44
  %vm131 = vmor %vm118, %vm45
  %vm132 = vmor %vm119, %vm46
  %vm133 = vmor %vm120, %vm47
  %vm134 = vmor %vm121, %vm48
  %vm135 = vmor %vm122, %vm49
  %vm136 = vmor %vm123, %vm50
  %vm137 = vmor %vm124, %vm51
  %v138 = vsel %vm125, 1, 0
  %v139 = vsel %vm126, 1, 0
  %v140 = vsel %vm127, 1, 0
  %v141 = vsel %vm128, 1, 0
  %v142 = vsel %vm129, 1, 0
  %v143 = vsel %vm130, 1, 0
  %v144 = vsel %vm131, 1, 0
  %v145 = vsel %vm132, 1, 0
  %v146 = vsel %vm133, 1, 0
  %v147 = vsel %vm134, 1, 0
  %v148 = vsel %vm135, 1, 0
  %v149 = vsel %vm136, 1, 0
  %v150 = vsel %vm137, 1, 0
  %v151 = vcvt.s32.f32 %v138
  %v152 = vcvt.s32.f32 %v139
  %v153 = vcvt.s32.f32 %v140
  %v154 = vcvt.s32.f32 %v141
  %v155 = vcvt.s32.f32 %v142
  %v156 = vcvt.s32.f32 %v143
  %v157 = vcvt.s32.f32 %v144
  %v158 = vcvt.s32.f32 %v145
  %v159 = vcvt.s32.f32 %v146
  %v160 = vcvt.s32.f32 %v147
  %v161 = vcvt.s32.f32 %v148
  %v162 = vcvt.s32.f32 %v149
  %v163 = vcvt.s32.f32 %v150
  %v164 = vlaneseq
  %v165 = vshrl.u32 %v164, 7
  %v166 = vsub.s32 2, %v165
  %v167 = vrot.slane %v20, %v166
  %vm168 = vcmp.eq.s32.totalorder %v26, %v167
  %vm169 = vcmp.eq.s32.totalorder %v27, %v167
  %vm170 = vcmp.eq.s32.totalorder %v28, %v167
  %vm171 = vcmp.eq.s32.totalorder %v29, %v167
  %vm172 = vcmp.eq.s32.totalorder %v30, %v167
  %vm173 = vcmp.eq.s32.totalorder %v31, %v167
  %vm174 = vcmp.eq.s32.totalorder %v32, %v167
  %vm175 = vcmp.eq.s32.totalorder %v33, %v167
  %vm176 = vcmp.eq.s32.totalorder %v34, %v167
  %vm177 = vcmp.eq.s32.totalorder %v35, %v167
  %vm178 = vcmp.eq.s32.totalorder %v36, %v167
  %vm179 = vcmp.eq.s32.totalorder %v37, %v167
  %vm180 = vcmp.eq.s32.totalorder %v38, %v167
  %vm181 = vmor %vm168, %vm39
  %vm182 = vmor %vm169, %vm40
  %vm183 = vmor %vm170, %vm41
  %vm184 = vmor %vm171, %vm42
  %vm185 = vmor %vm172, %vm43
  %vm186 = vmor %vm173, %vm44
  %vm187 = vmor %vm174, %vm45
  %vm188 = vmor %vm175, %vm46
  %vm189 = vmor %vm176, %vm47
  %vm190 = vmor %vm177, %vm48
  %vm191 = vmor %vm178, %vm49
  %vm192 = vmor %vm179, %vm50
  %vm193 = vmor %vm180, %vm51
  %v194 = vsel %vm181, 1, 0
  %v195 = vsel %vm182, 1, 0
  %v196 = vsel %vm183, 1, 0
  %v197 = vsel %vm184, 1, 0
  %v198 = vsel %vm185, 1, 0
  %v199 = vsel %vm186, 1, 0
  %v200 = vsel %vm187, 1, 0
  %v201 = vsel %vm188, 1, 0
  %v202 = vsel %vm189, 1, 0
  %v203 = vsel %vm190, 1, 0
  %v204 = vsel %vm191, 1, 0
  %v205 = vsel %vm192, 1, 0
  %v206 = vsel %vm193, 1, 0
  %v207 = vcvt.s32.f32 %v194
  %v208 = vcvt.s32.f32 %v195
  %v209 = vcvt.s32.f32 %v196
  %v210 = vcvt.s32.f32 %v197
  %v211 = vcvt.s32.f32 %v198
  %v212 = vcvt.s32.f32 %v199
  %v213 = vcvt.s32.f32 %v200
  %v214 = vcvt.s32.f32 %v201
  %v215 = vcvt.s32.f32 %v202
  %v216 = vcvt.s32.f32 %v203
  %v217 = vcvt.s32.f32 %v204
  %v218 = vcvt.s32.f32 %v205
  %v219 = vcvt.s32.f32 %v206
  %v220 = vlaneseq
  %v221 = vshrl.u32 %v220, 7
  %v222 = vsub.s32 3, %v221
  %v223 = vrot.slane %v20, %v222
  %vm224 = vcmp.eq.s32.totalorder %v26, %v223
  %vm225 = vcmp.eq.s32.totalorder %v27, %v223
  %vm226 = vcmp.eq.s32.totalorder %v28, %v223
  %vm227 = vcmp.eq.s32.totalorder %v29, %v223
  %vm228 = vcmp.eq.s32.totalorder %v30, %v223
  %vm229 = vcmp.eq.s32.totalorder %v31, %v223
  %vm230 = vcmp.eq.s32.totalorder %v32, %v223
  %vm231 = vcmp.eq.s32.totalorder %v33, %v223
  %vm232 = vcmp.eq.s32.totalorder %v34, %v223
  %vm233 = vcmp.eq.s32.totalorder %v35, %v223
  %vm234 = vcmp.eq.s32.totalorder %v36, %v223
  %vm235 = vcmp.eq.s32.totalorder %v37, %v223
  %vm236 = vcmp.eq.s32.totalorder %v38, %v223
  %vm237 = vmor %vm224, %vm39
  %vm238 = vmor %vm225, %vm40
  %vm239 = vmor %vm226, %vm41
  %vm240 = vmor %vm227, %vm42
  %vm241 = vmor %vm228, %vm43
  %vm242 = vmor %vm229, %vm44
  %vm243 = vmor %vm230, %vm45
  %vm244 = vmor %vm231, %vm46
  %vm245 = vmor %vm232, %vm47
  %vm246 = vmor %vm233, %vm48
  %vm247 = vmor %vm234, %vm49
  %vm248 = vmor %vm235, %vm50
  %vm249 = vmor %vm236, %vm51
  %v250 = vsel %vm237, 1, 0
  %v251 = vsel %vm238, 1, 0
  %v252 = vsel %vm239, 1, 0
  %v253 = vsel %vm240, 1, 0
  %v254 = vsel %vm241, 1, 0
  %v255 = vsel %vm242, 1, 0
  %v256 = vsel %vm243, 1, 0
  %v257 = vsel %vm244, 1, 0
  %v258 = vsel %vm245, 1, 0
  %v259 = vsel %vm246, 1, 0
  %v260 = vsel %vm247, 1, 0
  %v261 = vsel %vm248, 1, 0
  %v262 = vsel %vm249, 1, 0
  %v263 = vcvt.s32.f32 %v250
  %v264 = vcvt.s32.f32 %v251
  %v265 = vcvt.s32.f32 %v252
  %v266 = vcvt.s32.f32 %v253
  %v267 = vcvt.s32.f32 %v254
  %v268 = vcvt.s32.f32 %v255
  %v269 = vcvt.s32.f32 %v256
  %v270 = vcvt.s32.f32 %v257
  %v271 = vcvt.s32.f32 %v258
  %v272 = vcvt.s32.f32 %v259
  %v273 = vcvt.s32.f32 %v260
  %v274 = vcvt.s32.f32 %v261
  %v275 = vcvt.s32.f32 %v262
  %v276 = vlaneseq
  %v277 = vshrl.u32 %v276, 7
  %v278 = vsub.s32 4, %v277
  %v279 = vrot.slane %v20, %v278
  %vm280 = vcmp.eq.s32.totalorder %v26, %v279
  %vm281 = vcmp.eq.s32.totalorder %v27, %v279
  %vm282 = vcmp.eq.s32.totalorder %v28, %v279
  %vm283 = vcmp.eq.s32.totalorder %v29, %v279
  %vm284 = vcmp.eq.s32.totalorder %v30, %v279
  %vm285 = vcmp.eq.s32.totalorder %v31, %v279
  %vm286 = vcmp.eq.s32.totalorder %v32, %v279
  %vm287 = vcmp.eq.s32.totalorder %v33, %v279
  %vm288 = vcmp.eq.s32.totalorder %v34, %v279
  %vm289 = vcmp.eq.s32.totalorder %v35, %v279
  %vm290 = vcmp.eq.s32.totalorder %v36, %v279
  %vm291 = vcmp.eq.s32.totalorder %v37, %v279
  %vm292 = vcmp.eq.s32.totalorder %v38, %v279
  %vm293 = vmor %vm280, %vm39
  %vm294 = vmor %vm281, %vm40
  %vm295 = vmor %vm282, %vm41
  %vm296 = vmor %vm283, %vm42
  %vm297 = vmor %vm284, %vm43
  %vm298 = vmor %vm285, %vm44
  %vm299 = vmor %vm286, %vm45
  %vm300 = vmor %vm287, %vm46
  %vm301 = vmor %vm288, %vm47
  %vm302 = vmor %vm289, %vm48
  %vm303 = vmor %vm290, %vm49
  %vm304 = vmor %vm291, %vm50
  %vm305 = vmor %vm292, %vm51
  %v306 = vsel %vm293, 1, 0
  %v307 = vsel %vm294, 1, 0
  %v308 = vsel %vm295, 1, 0
  %v309 = vsel %vm296, 1, 0
  %v310 = vsel %vm297, 1, 0
  %v311 = vsel %vm298, 1, 0
  %v312 = vsel %vm299, 1, 0
  %v313 = vsel %vm300, 1, 0
  %v314 = vsel %vm301, 1, 0
  %v315 = vsel %vm302, 1, 0
  %v316 = vsel %vm303, 1, 0
  %v317 = vsel %vm304, 1, 0
  %v318 = vsel %vm305, 1, 0
  %v319 = vcvt.s32.f32 %v306
  %v320 = vcvt.s32.f32 %v307
  %v321 = vcvt.s32.f32 %v308
  %v322 = vcvt.s32.f32 %v309
  %v323 = vcvt.s32.f32 %v310
  %v324 = vcvt.s32.f32 %v311
  %v325 = vcvt.s32.f32 %v312
  %v326 = vcvt.s32.f32 %v313
  %v327 = vcvt.s32.f32 %v314
  %v328 = vcvt.s32.f32 %v315
  %v329 = vcvt.s32.f32 %v316
  %v330 = vcvt.s32.f32 %v317
  %v331 = vcvt.s32.f32 %v318
  %vm332 = vcmp.ge.s32.totalorder %v26, 4
  %vm333 = vcmp.lt.s32.totalorder %v26, 6
  %vm334 = vmand %vm332, %vm333
  %v335 = vsel %vm334, 1.0, 0.5
  %337 = vset.pattern.permute.xlu0 0
  %338 = vperm.xlu0 %337, %v22
  %v339 = vpop.permute.xlu0 %338
  %341 = vset.pattern.permute.xlu0 1
  %342 = vperm.xlu0 %341, %v22
  %v343 = vpop.permute.xlu0 %342
  %346 = vset.pattern.permute.xlu0 0
  %347 = vperm.xlu0 %346, %v24
  %v348 = vpop.permute.xlu0 %347
  %v350 = vmul.f32 %v339, 0.0
  %vm351 = vcmask 826368
  %v353 = vsel %vm351, %v21, 0
  %vm355 = vcmask 1044480
  %v357 = vsel %vm355, %v107, 0
  %359 = vmatprep.subr.mxu0 0.0
  %360 = vmatpush1.msra.mxu0 0.0
  %361 = vmatprep.subr.mxu0 0.0
  %362 = vmatpush1.msra.mxu0 0.0
  %363 = vmatprep.subr.mxu0 0.0
  %364 = vmatpush1.msra.mxu0 0.0
  %365 = vmatprep.subr.mxu0 0.0
  %366 = vmatpush1.msra.mxu0 %v357
  %367 = vmatprep.subr.mxu0 0.0
  %368 = vmatpush1.msra.mxu0 %v106
  %369 = vmatprep.subr.mxu0 0.0
  %370 = vmatpush1.msra.mxu0 %v105
  %371 = vmatprep.subr.mxu0 0.0
  %372 = vmatpush1.msra.mxu0 %v104
  %373 = vmatprep.subr.mxu0 0.0
  %374 = vmatpush1.msra.mxu0 %v103
  %375 = vmatprep.subr.mxu0 0.0
  %376 = vmatpush1.msra.mxu0 %v102
  %377 = vmatprep.subr.mxu0 0.0
  %378 = vmatpush1.msra.mxu0 %v101
  %379 = vmatprep.subr.mxu0 0.0
  %380 = vmatpush1.msra.mxu0 %v100
  %381 = vmatprep.subr.mxu0 0.0
  %382 = vmatpush1.msra.mxu0 %v99
  %383 = vmatprep.subr.mxu0 0.0
  %384 = vmatpush1.msra.mxu0 %v98
  %385 = vmatprep.subr.mxu0 0.0
  %386 = vmatpush1.msra.mxu0 %v97
  %387 = vmatprep.subr.mxu0 0.0
  %388 = vmatpush1.msra.mxu0 %v96
  %389 = vmatprep.subr.mxu0 0.0
  %390 = vmatpush1.msra.mxu0 %v95
  %391 = vmatprep.subr.mxu0 0.0
  %392 = vmatpush2.msra.mxu0 0.0
  %393 = vmatprep.subr.mxu0 0.0
  %394 = vmatpush2.msra.mxu0 0.0
  %395 = vmatprep.subr.mxu0 0.0
  %396 = vmatpush2.msra.mxu0 0.0
  %397 = vmatprep.subr.mxu0 0.0
  %398 = vmatpush2.msra.mxu0 0.0
  %399 = vmatprep.subr.mxu0 0.0
  %400 = vmatpush2.msra.mxu0 0.0
  %401 = vmatprep.subr.mxu0 0.0
  %402 = vmatpush2.msra.mxu0 0.0
  %403 = vmatprep.subr.mxu0 0.0
  %404 = vmatpush2.msra.mxu0 0.0
  %405 = vmatprep.subr.mxu0 0.0
  %406 = vmatpush2.msra.mxu0 0.0
  %407 = vmatprep.subr.mxu0 0.0
  %408 = vmatpush2.msra.mxu0 0.0
  %409 = vmatprep.subr.mxu0 0.0
  %410 = vmatpush2.msra.mxu0 0.0
  %411 = vmatprep.subr.mxu0 0.0
  %412 = vmatpush2.msra.mxu0 0.0
  %413 = vmatprep.subr.mxu0 0.0
  %414 = vmatpush2.msra.mxu0 0.0
  %415 = vmatprep.subr.mxu0 0.0
  %416 = vmatpush2.msra.mxu0 0.0
  %417 = vmatprep.subr.mxu0 0.0
  %418 = vmatpush2.msra.mxu0 0.0
  %419 = vmatprep.subr.mxu0 0.0
  %420 = vmatpush2.msra.mxu0 0.0
  %421 = vmatprep.subr.mxu0 0.0
  %422 = vmatpush2.msra.mxu0 0.0
  %423 = vmatprep.mubr.f32.mxu0 0.0
  %424 = vmatmul.mubr.f32.gmra.mxu0 %v353
  %v425 = vpop.f32.mrf.mxu0
  %v426 = vadd.f32 %v350, %v425
  %v427 = vpop.f32.mrf.mxu0
  %428 = vdwg.mxu0
  %v429 = vmul.f32 %v343, 0.0
  %v430 = vadd.f32 %v426, %v429
  %v431 = vmul.f32 %v430, %v335
  %v432 = vtanh.pop %v431
  %v433 = vmul.f32 %v432, 0.5
  %v434 = vadd.f32 %v433, 0.5
  %v435 = vsel %vm334, %v432, %v434
  %v436 = vmul.f32 %v435, 0.0
  %v438 = vrot.slane %v435, 4
  %v440 = vmul.f32 %v435, %v438
  %v442 = vrot.slane %v440, 6
  %v444 = vadd.f32 %v436, %v442
  %v445 = vtanh.pop %v444
  %v447 = vrot.slane %v445, 4
  %v449 = vmul.f32 %v435, %v447
  %451 = vset.pattern.permute.xlu0 0
  %452 = vperm.xlu0 %451, %v23
  %v453 = vpop.permute.xlu0 %452
  %v455 = vlaneseq
  %v456 = vshrl.u32 %v455, 7
  %v457 = vsub.s32 6, %v456
  %v458 = vrot.slane %v449, %v457
  %v459 = vmul.f32 %v453, %v458
  %v460 = vadd.f32 %v348, %v459
  %461 = vset.pattern.permute.xlu0 1
  %462 = vperm.xlu0 %461, %v23
  %v463 = vpop.permute.xlu0 %462
  %v465 = vlaneseq
  %v466 = vshrl.u32 %v465, 7
  %v467 = vsub.s32 7, %v466
  %v468 = vrot.slane %v449, %v467
  %v469 = vmul.f32 %v463, %v468
  %v470 = vadd.f32 %v460, %v469
  %v471 = vmul.f32 %v339, %v458
  %v473 = vsel %vm355, %v163, 0
  %475 = vmatprep.subr.mxu0 0.0
  %476 = vmatpush1.msra.mxu0 0.0
  %477 = vmatprep.subr.mxu0 0.0
  %478 = vmatpush1.msra.mxu0 0.0
  %479 = vmatprep.subr.mxu0 0.0
  %480 = vmatpush1.msra.mxu0 0.0
  %481 = vmatprep.subr.mxu0 0.0
  %482 = vmatpush1.msra.mxu0 %v473
  %483 = vmatprep.subr.mxu0 0.0
  %484 = vmatpush1.msra.mxu0 %v162
  %485 = vmatprep.subr.mxu0 0.0
  %486 = vmatpush1.msra.mxu0 %v161
  %487 = vmatprep.subr.mxu0 0.0
  %488 = vmatpush1.msra.mxu0 %v160
  %489 = vmatprep.subr.mxu0 0.0
  %490 = vmatpush1.msra.mxu0 %v159
  %491 = vmatprep.subr.mxu0 0.0
  %492 = vmatpush1.msra.mxu0 %v158
  %493 = vmatprep.subr.mxu0 0.0
  %494 = vmatpush1.msra.mxu0 %v157
  %495 = vmatprep.subr.mxu0 0.0
  %496 = vmatpush1.msra.mxu0 %v156
  %497 = vmatprep.subr.mxu0 0.0
  %498 = vmatpush1.msra.mxu0 %v155
  %499 = vmatprep.subr.mxu0 0.0
  %500 = vmatpush1.msra.mxu0 %v154
  %501 = vmatprep.subr.mxu0 0.0
  %502 = vmatpush1.msra.mxu0 %v153
  %503 = vmatprep.subr.mxu0 0.0
  %504 = vmatpush1.msra.mxu0 %v152
  %505 = vmatprep.subr.mxu0 0.0
  %506 = vmatpush1.msra.mxu0 %v151
  %507 = vmatprep.subr.mxu0 0.0
  %508 = vmatpush2.msra.mxu0 0.0
  %509 = vmatprep.subr.mxu0 0.0
  %510 = vmatpush2.msra.mxu0 0.0
  %511 = vmatprep.subr.mxu0 0.0
  %512 = vmatpush2.msra.mxu0 0.0
  %513 = vmatprep.subr.mxu0 0.0
  %514 = vmatpush2.msra.mxu0 0.0
  %515 = vmatprep.subr.mxu0 0.0
  %516 = vmatpush2.msra.mxu0 0.0
  %517 = vmatprep.subr.mxu0 0.0
  %518 = vmatpush2.msra.mxu0 0.0
  %519 = vmatprep.subr.mxu0 0.0
  %520 = vmatpush2.msra.mxu0 0.0
  %521 = vmatprep.subr.mxu0 0.0
  %522 = vmatpush2.msra.mxu0 0.0
  %523 = vmatprep.subr.mxu0 0.0
  %524 = vmatpush2.msra.mxu0 0.0
  %525 = vmatprep.subr.mxu0 0.0
  %526 = vmatpush2.msra.mxu0 0.0
  %527 = vmatprep.subr.mxu0 0.0
  %528 = vmatpush2.msra.mxu0 0.0
  %529 = vmatprep.subr.mxu0 0.0
  %530 = vmatpush2.msra.mxu0 0.0
  %531 = vmatprep.subr.mxu0 0.0
  %532 = vmatpush2.msra.mxu0 0.0
  %533 = vmatprep.subr.mxu0 0.0
  %534 = vmatpush2.msra.mxu0 0.0
  %535 = vmatprep.subr.mxu0 0.0
  %536 = vmatpush2.msra.mxu0 0.0
  %537 = vmatprep.subr.mxu0 0.0
  %538 = vmatpush2.msra.mxu0 0.0
  %539 = vmatprep.mubr.f32.mxu0 0.0
  %540 = vmatmul.mubr.f32.gmra.mxu0 %v353
  %v541 = vpop.f32.mrf.mxu0
  %v542 = vadd.f32 %v471, %v541
  %v543 = vpop.f32.mrf.mxu0
  %544 = vdwg.mxu0
  %v545 = vmul.f32 %v343, %v468
  %v546 = vadd.f32 %v542, %v545
  %v547 = vmul.f32 %v546, %v335
  %v548 = vtanh.pop %v547
  %v549 = vmul.f32 %v548, 0.5
  %v550 = vadd.f32 %v549, 0.5
  %v551 = vsel %vm334, %v548, %v550
  %v552 = vmul.f32 %v551, %v444
  %v554 = vrot.slane %v551, 4
  %v556 = vmul.f32 %v551, %v554
  %v558 = vrot.slane %v556, 6
  %v560 = vadd.f32 %v552, %v558
  %v561 = vtanh.pop %v560
  %v563 = vrot.slane %v561, 4
  %v565 = vmul.f32 %v551, %v563
  %566 = vset.pattern.permute.xlu0 2
  %567 = vperm.xlu0 %566, %v23
  %v568 = vpop.permute.xlu0 %567
  %v570 = vlaneseq
  %v571 = vshrl.u32 %v570, 7
  %v572 = vsub.s32 6, %v571
  %v573 = vrot.slane %v565, %v572
  %v574 = vmul.f32 %v568, %v573
  %v575 = vadd.f32 %v470, %v574
  %576 = vset.pattern.permute.xlu0 3
  %577 = vperm.xlu0 %576, %v23
  %v578 = vpop.permute.xlu0 %577
  %v580 = vlaneseq
  %v581 = vshrl.u32 %v580, 7
  %v582 = vsub.s32 7, %v581
  %v583 = vrot.slane %v565, %v582
  %v584 = vmul.f32 %v578, %v583
  %v585 = vadd.f32 %v575, %v584
  %v586 = vmul.f32 %v339, %v573
  %v588 = vsel %vm355, %v219, 0
  %590 = vmatprep.subr.mxu0 0.0
  %591 = vmatpush1.msra.mxu0 0.0
  %592 = vmatprep.subr.mxu0 0.0
  %593 = vmatpush1.msra.mxu0 0.0
  %594 = vmatprep.subr.mxu0 0.0
  %595 = vmatpush1.msra.mxu0 0.0
  %596 = vmatprep.subr.mxu0 0.0
  %597 = vmatpush1.msra.mxu0 %v588
  %598 = vmatprep.subr.mxu0 0.0
  %599 = vmatpush1.msra.mxu0 %v218
  %600 = vmatprep.subr.mxu0 0.0
  %601 = vmatpush1.msra.mxu0 %v217
  %602 = vmatprep.subr.mxu0 0.0
  %603 = vmatpush1.msra.mxu0 %v216
  %604 = vmatprep.subr.mxu0 0.0
  %605 = vmatpush1.msra.mxu0 %v215
  %606 = vmatprep.subr.mxu0 0.0
  %607 = vmatpush1.msra.mxu0 %v214
  %608 = vmatprep.subr.mxu0 0.0
  %609 = vmatpush1.msra.mxu0 %v213
  %610 = vmatprep.subr.mxu0 0.0
  %611 = vmatpush1.msra.mxu0 %v212
  %612 = vmatprep.subr.mxu0 0.0
  %613 = vmatpush1.msra.mxu0 %v211
  %614 = vmatprep.subr.mxu0 0.0
  %615 = vmatpush1.msra.mxu0 %v210
  %616 = vmatprep.subr.mxu0 0.0
  %617 = vmatpush1.msra.mxu0 %v209
  %618 = vmatprep.subr.mxu0 0.0
  %619 = vmatpush1.msra.mxu0 %v208
  %620 = vmatprep.subr.mxu0 0.0
  %621 = vmatpush1.msra.mxu0 %v207
  %622 = vmatprep.subr.mxu0 0.0
  %623 = vmatpush2.msra.mxu0 0.0
  %624 = vmatprep.subr.mxu0 0.0
  %625 = vmatpush2.msra.mxu0 0.0
  %626 = vmatprep.subr.mxu0 0.0
  %627 = vmatpush2.msra.mxu0 0.0
  %628 = vmatprep.subr.mxu0 0.0
  %629 = vmatpush2.msra.mxu0 0.0
  %630 = vmatprep.subr.mxu0 0.0
  %631 = vmatpush2.msra.mxu0 0.0
  %632 = vmatprep.subr.mxu0 0.0
  %633 = vmatpush2.msra.mxu0 0.0
  %634 = vmatprep.subr.mxu0 0.0
  %635 = vmatpush2.msra.mxu0 0.0
  %636 = vmatprep.subr.mxu0 0.0
  %637 = vmatpush2.msra.mxu0 0.0
  %638 = vmatprep.subr.mxu0 0.0
  %639 = vmatpush2.msra.mxu0 0.0
  %640 = vmatprep.subr.mxu0 0.0
  %641 = vmatpush2.msra.mxu0 0.0
  %642 = vmatprep.subr.mxu0 0.0
  %643 = vmatpush2.msra.mxu0 0.0
  %644 = vmatprep.subr.mxu0 0.0
  %645 = vmatpush2.msra.mxu0 0.0
  %646 = vmatprep.subr.mxu0 0.0
  %647 = vmatpush2.msra.mxu0 0.0
  %648 = vmatprep.subr.mxu0 0.0
  %649 = vmatpush2.msra.mxu0 0.0
  %650 = vmatprep.subr.mxu0 0.0
  %651 = vmatpush2.msra.mxu0 0.0
  %652 = vmatprep.subr.mxu0 0.0
  %653 = vmatpush2.msra.mxu0 0.0
  %654 = vmatprep.mubr.f32.mxu0 0.0
  %655 = vmatmul.mubr.f32.gmra.mxu0 %v353
  %v656 = vpop.f32.mrf.mxu0
  %v657 = vadd.f32 %v586, %v656
  %v658 = vpop.f32.mrf.mxu0
  %659 = vdwg.mxu0
  %v660 = vmul.f32 %v343, %v583
  %v661 = vadd.f32 %v657, %v660
  %v662 = vmul.f32 %v661, %v335
  %v663 = vtanh.pop %v662
  %v664 = vmul.f32 %v663, 0.5
  %v665 = vadd.f32 %v664, 0.5
  %v666 = vsel %vm334, %v663, %v665
  %v667 = vmul.f32 %v666, %v560
  %v669 = vrot.slane %v666, 4
  %v671 = vmul.f32 %v666, %v669
  %v673 = vrot.slane %v671, 6
  %v675 = vadd.f32 %v667, %v673
  %v676 = vtanh.pop %v675
  %v678 = vrot.slane %v676, 4
  %v680 = vmul.f32 %v666, %v678
  %681 = vset.pattern.permute.xlu0 4
  %682 = vperm.xlu0 %681, %v23
  %v683 = vpop.permute.xlu0 %682
  %v685 = vlaneseq
  %v686 = vshrl.u32 %v685, 7
  %v687 = vsub.s32 6, %v686
  %v688 = vrot.slane %v680, %v687
  %v689 = vmul.f32 %v683, %v688
  %v690 = vadd.f32 %v585, %v689
  %691 = vset.pattern.permute.xlu0 5
  %692 = vperm.xlu0 %691, %v23
  %v693 = vpop.permute.xlu0 %692
  %v695 = vlaneseq
  %v696 = vshrl.u32 %v695, 7
  %v697 = vsub.s32 7, %v696
  %v698 = vrot.slane %v680, %v697
  %v699 = vmul.f32 %v693, %v698
  %v700 = vadd.f32 %v690, %v699
  %v701 = vmul.f32 %v339, %v688
  %v703 = vsel %vm355, %v275, 0
  %705 = vmatprep.subr.mxu0 0.0
  %706 = vmatpush1.msra.mxu0 0.0
  %707 = vmatprep.subr.mxu0 0.0
  %708 = vmatpush1.msra.mxu0 0.0
  %709 = vmatprep.subr.mxu0 0.0
  %710 = vmatpush1.msra.mxu0 0.0
  %711 = vmatprep.subr.mxu0 0.0
  %712 = vmatpush1.msra.mxu0 %v703
  %713 = vmatprep.subr.mxu0 0.0
  %714 = vmatpush1.msra.mxu0 %v274
  %715 = vmatprep.subr.mxu0 0.0
  %716 = vmatpush1.msra.mxu0 %v273
  %717 = vmatprep.subr.mxu0 0.0
  %718 = vmatpush1.msra.mxu0 %v272
  %719 = vmatprep.subr.mxu0 0.0
  %720 = vmatpush1.msra.mxu0 %v271
  %721 = vmatprep.subr.mxu0 0.0
  %722 = vmatpush1.msra.mxu0 %v270
  %723 = vmatprep.subr.mxu0 0.0
  %724 = vmatpush1.msra.mxu0 %v269
  %725 = vmatprep.subr.mxu0 0.0
  %726 = vmatpush1.msra.mxu0 %v268
  %727 = vmatprep.subr.mxu0 0.0
  %728 = vmatpush1.msra.mxu0 %v267
  %729 = vmatprep.subr.mxu0 0.0
  %730 = vmatpush1.msra.mxu0 %v266
  %731 = vmatprep.subr.mxu0 0.0
  %732 = vmatpush1.msra.mxu0 %v265
  %733 = vmatprep.subr.mxu0 0.0
  %734 = vmatpush1.msra.mxu0 %v264
  %735 = vmatprep.subr.mxu0 0.0
  %736 = vmatpush1.msra.mxu0 %v263
  %737 = vmatprep.subr.mxu0 0.0
  %738 = vmatpush2.msra.mxu0 0.0
  %739 = vmatprep.subr.mxu0 0.0
  %740 = vmatpush2.msra.mxu0 0.0
  %741 = vmatprep.subr.mxu0 0.0
  %742 = vmatpush2.msra.mxu0 0.0
  %743 = vmatprep.subr.mxu0 0.0
  %744 = vmatpush2.msra.mxu0 0.0
  %745 = vmatprep.subr.mxu0 0.0
  %746 = vmatpush2.msra.mxu0 0.0
  %747 = vmatprep.subr.mxu0 0.0
  %748 = vmatpush2.msra.mxu0 0.0
  %749 = vmatprep.subr.mxu0 0.0
  %750 = vmatpush2.msra.mxu0 0.0
  %751 = vmatprep.subr.mxu0 0.0
  %752 = vmatpush2.msra.mxu0 0.0
  %753 = vmatprep.subr.mxu0 0.0
  %754 = vmatpush2.msra.mxu0 0.0
  %755 = vmatprep.subr.mxu0 0.0
  %756 = vmatpush2.msra.mxu0 0.0
  %757 = vmatprep.subr.mxu0 0.0
  %758 = vmatpush2.msra.mxu0 0.0
  %759 = vmatprep.subr.mxu0 0.0
  %760 = vmatpush2.msra.mxu0 0.0
  %761 = vmatprep.subr.mxu0 0.0
  %762 = vmatpush2.msra.mxu0 0.0
  %763 = vmatprep.subr.mxu0 0.0
  %764 = vmatpush2.msra.mxu0 0.0
  %765 = vmatprep.subr.mxu0 0.0
  %766 = vmatpush2.msra.mxu0 0.0
  %767 = vmatprep.subr.mxu0 0.0
  %768 = vmatpush2.msra.mxu0 0.0
  %769 = vmatprep.mubr.f32.mxu0 0.0
  %770 = vmatmul.mubr.f32.gmra.mxu0 %v353
  %v771 = vpop.f32.mrf.mxu0
  %v772 = vadd.f32 %v701, %v771
  %v773 = vpop.f32.mrf.mxu0
  %774 = vdwg.mxu0
  %v775 = vmul.f32 %v343, %v698
  %v776 = vadd.f32 %v772, %v775
  %v777 = vmul.f32 %v776, %v335
  %v778 = vtanh.pop %v777
  %v779 = vmul.f32 %v778, 0.5
  %v780 = vadd.f32 %v779, 0.5
  %v781 = vsel %vm334, %v778, %v780
  %v782 = vmul.f32 %v781, %v675
  %v784 = vrot.slane %v781, 4
  %v786 = vmul.f32 %v781, %v784
  %v788 = vrot.slane %v786, 6
  %v790 = vadd.f32 %v782, %v788
  %v791 = vtanh.pop %v790
  %v793 = vrot.slane %v791, 4
  %v795 = vmul.f32 %v781, %v793
  %796 = vset.pattern.permute.xlu0 6
  %797 = vperm.xlu0 %796, %v23
  %v798 = vpop.permute.xlu0 %797
  %v800 = vlaneseq
  %v801 = vshrl.u32 %v800, 7
  %v802 = vsub.s32 6, %v801
  %v803 = vrot.slane %v795, %v802
  %v804 = vmul.f32 %v798, %v803
  %v805 = vadd.f32 %v700, %v804
  %806 = vset.pattern.permute.xlu0 7
  %807 = vperm.xlu0 %806, %v23
  %v808 = vpop.permute.xlu0 %807
  %v810 = vlaneseq
  %v811 = vshrl.u32 %v810, 7
  %v812 = vsub.s32 7, %v811
  %v813 = vrot.slane %v795, %v812
  %v814 = vmul.f32 %v808, %v813
  %v815 = vadd.f32 %v805, %v814
  %v816 = vmul.f32 %v339, %v803
  %v818 = vsel %vm355, %v331, 0
  %820 = vmatprep.subr.mxu0 0.0
  %821 = vmatpush1.msra.mxu0 0.0
  %822 = vmatprep.subr.mxu0 0.0
  %823 = vmatpush1.msra.mxu0 0.0
  %824 = vmatprep.subr.mxu0 0.0
  %825 = vmatpush1.msra.mxu0 0.0
  %826 = vmatprep.subr.mxu0 0.0
  %827 = vmatpush1.msra.mxu0 %v818
  %828 = vmatprep.subr.mxu0 0.0
  %829 = vmatpush1.msra.mxu0 %v330
  %830 = vmatprep.subr.mxu0 0.0
  %831 = vmatpush1.msra.mxu0 %v329
  %832 = vmatprep.subr.mxu0 0.0
  %833 = vmatpush1.msra.mxu0 %v328
  %834 = vmatprep.subr.mxu0 0.0
  %835 = vmatpush1.msra.mxu0 %v327
  %836 = vmatprep.subr.mxu0 0.0
  %837 = vmatpush1.msra.mxu0 %v326
  %838 = vmatprep.subr.mxu0 0.0
  %839 = vmatpush1.msra.mxu0 %v325
  %840 = vmatprep.subr.mxu0 0.0
  %841 = vmatpush1.msra.mxu0 %v324
  %842 = vmatprep.subr.mxu0 0.0
  %843 = vmatpush1.msra.mxu0 %v323
  %844 = vmatprep.subr.mxu0 0.0
  %845 = vmatpush1.msra.mxu0 %v322
  %846 = vmatprep.subr.mxu0 0.0
  %847 = vmatpush1.msra.mxu0 %v321
  %848 = vmatprep.subr.mxu0 0.0
  %849 = vmatpush1.msra.mxu0 %v320
  %850 = vmatprep.subr.mxu0 0.0
  %851 = vmatpush1.msra.mxu0 %v319
  %852 = vmatprep.subr.mxu0 0.0
  %853 = vmatpush2.msra.mxu0 0.0
  %854 = vmatprep.subr.mxu0 0.0
  %855 = vmatpush2.msra.mxu0 0.0
  %856 = vmatprep.subr.mxu0 0.0
  %857 = vmatpush2.msra.mxu0 0.0
  %858 = vmatprep.subr.mxu0 0.0
  %859 = vmatpush2.msra.mxu0 0.0
  %860 = vmatprep.subr.mxu0 0.0
  %861 = vmatpush2.msra.mxu0 0.0
  %862 = vmatprep.subr.mxu0 0.0
  %863 = vmatpush2.msra.mxu0 0.0
  %864 = vmatprep.subr.mxu0 0.0
  %865 = vmatpush2.msra.mxu0 0.0
  %866 = vmatprep.subr.mxu0 0.0
  %867 = vmatpush2.msra.mxu0 0.0
  %868 = vmatprep.subr.mxu0 0.0
  %869 = vmatpush2.msra.mxu0 0.0
  %870 = vmatprep.subr.mxu0 0.0
  %871 = vmatpush2.msra.mxu0 0.0
  %872 = vmatprep.subr.mxu0 0.0
  %873 = vmatpush2.msra.mxu0 0.0
  %874 = vmatprep.subr.mxu0 0.0
  %875 = vmatpush2.msra.mxu0 0.0
  %876 = vmatprep.subr.mxu0 0.0
  %877 = vmatpush2.msra.mxu0 0.0
  %878 = vmatprep.subr.mxu0 0.0
  %879 = vmatpush2.msra.mxu0 0.0
  %880 = vmatprep.subr.mxu0 0.0
  %881 = vmatpush2.msra.mxu0 0.0
  %882 = vmatprep.subr.mxu0 0.0
  %883 = vmatpush2.msra.mxu0 0.0
  %884 = vmatprep.mubr.f32.mxu0 0.0
  %885 = vmatmul.mubr.f32.gmra.mxu0 %v353
  %v886 = vpop.f32.mrf.mxu0
  %v887 = vadd.f32 %v816, %v886
  %v888 = vpop.f32.mrf.mxu0
  %889 = vdwg.mxu0
  %v890 = vmul.f32 %v343, %v813
  %v891 = vadd.f32 %v887, %v890
  %v892 = vmul.f32 %v891, %v335
  %v893 = vtanh.pop %v892
  %v894 = vmul.f32 %v893, 0.5
  %v895 = vadd.f32 %v894, 0.5
  %v896 = vsel %vm334, %v893, %v895
  %v897 = vmul.f32 %v896, %v790
  %v899 = vrot.slane %v896, 4
  %v901 = vmul.f32 %v896, %v899
  %v903 = vrot.slane %v901, 6
  %v905 = vadd.f32 %v897, %v903
  %v906 = vtanh.pop %v905
  %v908 = vrot.slane %v906, 4
  %v910 = vmul.f32 %v896, %v908
  %911 = vset.pattern.permute.xlu0 8
  %912 = vperm.xlu0 %911, %v23
  %v913 = vpop.permute.xlu0 %912
  %v915 = vlaneseq
  %v916 = vshrl.u32 %v915, 7
  %v917 = vsub.s32 6, %v916
  %v918 = vrot.slane %v910, %v917
  %v919 = vmul.f32 %v913, %v918
  %v920 = vadd.f32 %v815, %v919
  %921 = vset.pattern.permute.xlu0 9
  %922 = vperm.xlu0 %921, %v23
  %v923 = vpop.permute.xlu0 %922
  %v925 = vlaneseq
  %v926 = vshrl.u32 %v925, 7
  %v927 = vsub.s32 7, %v926
  %v928 = vrot.slane %v910, %v927
  %v929 = vmul.f32 %v923, %v928
  %v930 = vadd.f32 %v920, %v929
  %v931 = vxor.u32 %v930, 2147483648
  %v932 = vmul.f32 %v931, 1.442695
  %v933 = vpow.pop %v932
  %v934 = vadd.f32 %v933, 1.0
  %v935 = vrcp.pop %v934
  %v936 = vmul.f32 1.0, %v935
  %v937 = vmul.f32 %v936, 9.0
  %938 = vst [vmem:[%s5] sm:$0x1f] %v937
  // Predicated region
  $region22: #{embedding_lstm_forward.1} parent=0 // pred_check
    _
  $region23: #{embedding_lstm_forward.1} parent=0 // pred_check_branch
    %940 = sbr.rel (0) target = $region25
  $region24: #{embedding_lstm_forward.1} parent=0 // pred_region
    _
  $region25: #{embedding_lstm_forward.1} parent=0 // pred_fallthru
    _
  // Predicated region
  $region26: #{embedding_lstm_forward.1} parent=0 // pred_check
    _
  $region27: #{embedding_lstm_forward.1} parent=0 // pred_check_branch
    %942 = sbr.rel (0) target = $region29
  $region28: #{embedding_lstm_forward.1} parent=0 // pred_region
    _
  $region29: #{embedding_lstm_forward.1} parent=0 // pred_fallthru
    _

</llo_original>
